<compile_context>
chip_gen: v6e
topology: v6e:2x2x1
jax: 0.10.0
libtpu: 0.0.40
codegen_flags: <defaults>
</compile_context>

<pallas_src>
import jax
import jax.numpy as jnp
from jax.experimental import pallas as pl
from jax.experimental.pallas import tpu as pltpu

IN_DIM = 5
IN_PAD = 8                          # feature dim padded 5 -> 8 for aligned loads
HIDDEN = 64
NUM_NUKE_STRATEGIES = 3
HEAD_W = 1 + NUM_NUKE_STRATEGIES    # fused [value | nuke_logits] head width
LN_EPS = 1e-5


def _round_up(n, m):
    return ((n + m - 1) // m) * m


def _layernorm_fused(h, gamma, beta):
    """Single-pass LayerNorm: sum & sum-of-squares in one sweep (biased var)."""
    inv_d = 1.0 / HIDDEN
    s = jnp.sum(h, axis=-1, keepdims=True)
    s2 = jnp.sum(h * h, axis=-1, keepdims=True)
    mu = s * inv_d
    var = jnp.maximum(s2 * inv_d - mu * mu, 0.0)
    return (h - mu) * jax.lax.rsqrt(var + LN_EPS) * gamma + beta


def model_kernel(
    x_ref,
    w1_ref, b1_ref, g1_ref, be1_ref,
    w2_ref, b2_ref, g2_ref, be2_ref,
    wh_ref, bh_ref,
    out_ref,
):
    x = x_ref[...]

    # fc1 -> LayerNorm -> ReLU
    h = jnp.dot(x, w1_ref[...], preferred_element_type=jnp.float32) + b1_ref[...]
    h = _layernorm_fused(h, g1_ref[...], be1_ref[...])
    h = jnp.maximum(h, 0.0)

    # fc2 -> LayerNorm -> ReLU
    h = jnp.dot(h, w2_ref[...], preferred_element_type=jnp.float32) + b2_ref[...]
    h = _layernorm_fused(h, g2_ref[...], be2_ref[...])
    h = jnp.maximum(h, 0.0)

    # fused heads: lane 0 = value, lanes 1..HEAD_W-1 = nuke logits
    heads = jnp.dot(h, wh_ref[...], preferred_element_type=jnp.float32) + bh_ref[...]

    # masked log_softmax over lanes 1.., lane 0 (value) passes through untouched
    lane = jax.lax.broadcasted_iota(jnp.int32, heads.shape, 1)
    is_logit = lane >= 1
    m = jnp.max(jnp.where(is_logit, heads, -jnp.inf), axis=-1, keepdims=True)
    z = heads - m
    e = jnp.where(is_logit, jnp.exp(z), 0.0)
    lse = jnp.log(jnp.sum(e, axis=-1, keepdims=True))
    out_ref[...] = jnp.where(is_logit, z - lse, heads)


def model_forward(x, params, tile_b=512):
    bz, fin = x.shape
    assert fin == IN_DIM
    (w1, b1, g1, be1, w2, b2, g2, be2, wv, bv, wn, bn) = params

    # fuse the two tiny output heads into a single (HIDDEN, HEAD_W) matmul
    wh = jnp.concatenate([wv, wn], axis=1)           # (64, 4)
    bh = jnp.concatenate([bv, bn], axis=1)           # (1, 4)

    # pad input features 5 -> 8 (zero rows in w1 keep the math identical)
    w1_p = jnp.zeros((IN_PAD, HIDDEN), w1.dtype).at[:IN_DIM, :].set(w1)

    # batch tiling: tile is a multiple of 8; pad batch to a multiple of it
    tile = min(tile_b, _round_up(bz, 8))
    bz_pad = _round_up(bz, tile)
    x_p = jnp.pad(x, ((0, bz_pad - bz), (0, IN_PAD - IN_DIM)))

    grid = (bz_pad // tile,)

    def resident(shape):
        # weights / biases stay resident in VMEM across all grid steps
        return pl.BlockSpec(shape, lambda i: (0, 0))

    out = pl.pallas_call(
        model_kernel,
        out_shape=jax.ShapeDtypeStruct((bz_pad, HEAD_W), jnp.float32),
        grid=grid,
        in_specs=[
            pl.BlockSpec((tile, IN_PAD), lambda i: (i, 0)),   # streamed x
            resident((IN_PAD, HIDDEN)), resident((1, HIDDEN)),
            resident((1, HIDDEN)), resident((1, HIDDEN)),
            resident((HIDDEN, HIDDEN)), resident((1, HIDDEN)),
            resident((1, HIDDEN)), resident((1, HIDDEN)),
            resident((HIDDEN, HEAD_W)), resident((1, HEAD_W)),
        ],
        out_specs=pl.BlockSpec((tile, HEAD_W), lambda i: (i, 0)),
        compiler_params=pltpu.CompilerParams(
            dimension_semantics=("parallel",)),
    )(x_p, w1_p, b1, g1, be1, w2, b2, g2, be2, wh, bh)

    value = out[:bz, 0:1]
    logp = out[:bz, 1:HEAD_W]
    return value, logp


def init_params(key):
    """Deterministic init; Linear weights kept as (in, out), biases as (1, out)."""
    keys = jax.random.split(key, 8)

    def lin(kw, kb, fan_in, fan_out):
        bound = 1.0 / jnp.sqrt(fan_in)
        w = jax.random.uniform(kw, (fan_in, fan_out), jnp.float32, -bound, bound)
        b = jax.random.uniform(kb, (1, fan_out), jnp.float32, -bound, bound)
        return w, b

    w1, b1 = lin(keys[0], keys[1], IN_DIM, HIDDEN)
    g1 = jnp.ones((1, HIDDEN), jnp.float32)
    be1 = jnp.zeros((1, HIDDEN), jnp.float32)

    w2, b2 = lin(keys[2], keys[3], HIDDEN, HIDDEN)
    g2 = jnp.ones((1, HIDDEN), jnp.float32)
    be2 = jnp.zeros((1, HIDDEN), jnp.float32)

    wv, bv = lin(keys[4], keys[5], HIDDEN, 1)
    wn, bn = lin(keys[6], keys[7], HIDDEN, NUM_NUKE_STRATEGIES)

    return (w1, b1, g1, be1, w2, b2, g2, be2, wv, bv, wn, bn)


def _layernorm_ref(h, gamma, beta):
    # PyTorch LayerNorm: biased variance over the last dim (two-pass reference).
    mu = jnp.mean(h, axis=-1, keepdims=True)
    var = jnp.mean((h - mu) * (h - mu), axis=-1, keepdims=True)
    return (h - mu) * jax.lax.rsqrt(var + LN_EPS) * gamma + beta


def reference_forward(x, params):
    (w1, b1, g1, be1, w2, b2, g2, be2, wv, bv, wn, bn) = params
    h = x @ w1 + b1
    h = _layernorm_ref(h, g1, be1)
    h = jnp.maximum(h, 0.0)
    h = h @ w2 + b2
    h = _layernorm_ref(h, g2, be2)
    h = jnp.maximum(h, 0.0)
    value = h @ wv + bv
    logits = h @ wn + bn
    logp = jax.nn.log_softmax(logits, axis=-1)
    return value, logp


if __name__ == "__main__":
    key = jax.random.PRNGKey(0)
    kx, kp, kx2 = jax.random.split(key, 3)
    params = init_params(kp)

    # small single-tile case (grid = 1)
    batch = 8
    x = jax.random.normal(kx, (batch, IN_DIM), jnp.float32)
    value, logp = model_forward(x, params)
    value = jax.block_until_ready(value)
    logp = jax.block_until_ready(logp)
    ref_value, ref_logp = reference_forward(x, params)
    assert value.shape == (batch, 1)
    assert logp.shape == (batch, NUM_NUKE_STRATEGIES)
    assert jnp.allclose(value, ref_value, atol=2e-5, rtol=2e-5)
    assert jnp.allclose(logp, ref_logp, atol=2e-5, rtol=2e-5)

    # multi-step grid + tail-padding case (batch not a multiple of the tile)
    batch2 = 20
    x2 = jax.random.normal(kx2, (batch2, IN_DIM), jnp.float32)
    value2, logp2 = model_forward(x2, params, tile_b=8)
    value2 = jax.block_until_ready(value2)
    logp2 = jax.block_until_ready(logp2)
    ref_value2, ref_logp2 = reference_forward(x2, params)
    assert value2.shape == (batch2, 1)
    assert logp2.shape == (batch2, NUM_NUKE_STRATEGIES)
    assert jnp.allclose(value2, ref_value2, atol=2e-5, rtol=2e-5)
    assert jnp.allclose(logp2, ref_logp2, atol=2e-5, rtol=2e-5)

    print("KERNEL_OK")
</pallas_src>

<mosaic_0001>
module attributes {stable_mosaic.version = 11 : i64} {
  func.func @model_kernel(%arg0: i32, %arg1: memref<8x8xf32, #tpu.memory_space<vmem>>, %arg2: memref<8x64xf32, #tpu.memory_space<vmem>>, %arg3: memref<1x64xf32, #tpu.memory_space<vmem>>, %arg4: memref<1x64xf32, #tpu.memory_space<vmem>>, %arg5: memref<1x64xf32, #tpu.memory_space<vmem>>, %arg6: memref<64x64xf32, #tpu.memory_space<vmem>>, %arg7: memref<1x64xf32, #tpu.memory_space<vmem>>, %arg8: memref<1x64xf32, #tpu.memory_space<vmem>>, %arg9: memref<1x64xf32, #tpu.memory_space<vmem>>, %arg10: memref<64x4xf32, #tpu.memory_space<vmem>>, %arg11: memref<1x4xf32, #tpu.memory_space<vmem>>, %arg12: memref<8x4xf32, #tpu.memory_space<vmem>>) attributes {dimension_semantics = [#tpu.dimension_semantics<parallel>], iteration_bounds = array<i64: 1>, scalar_prefetch = 0 : i64, scratch_operands = 0 : i64, tpu.core_type = #tpu.core_type<tc>, window_params = [{transform_indices = @transform_0, window_bounds = array<i64: 8, 8>}, {pipeline_mode = #tpu.pipeline_mode<synchronous>, transform_indices = @transform_1, window_bounds = array<i64: 8, 64>}, {pipeline_mode = #tpu.pipeline_mode<synchronous>, transform_indices = @transform_2, window_bounds = array<i64: 1, 64>}, {pipeline_mode = #tpu.pipeline_mode<synchronous>, transform_indices = @transform_3, window_bounds = array<i64: 1, 64>}, {pipeline_mode = #tpu.pipeline_mode<synchronous>, transform_indices = @transform_4, window_bounds = array<i64: 1, 64>}, {pipeline_mode = #tpu.pipeline_mode<synchronous>, transform_indices = @transform_5, window_bounds = array<i64: 64, 64>}, {pipeline_mode = #tpu.pipeline_mode<synchronous>, transform_indices = @transform_6, window_bounds = array<i64: 1, 64>}, {pipeline_mode = #tpu.pipeline_mode<synchronous>, transform_indices = @transform_7, window_bounds = array<i64: 1, 64>}, {pipeline_mode = #tpu.pipeline_mode<synchronous>, transform_indices = @transform_8, window_bounds = array<i64: 1, 64>}, {pipeline_mode = #tpu.pipeline_mode<synchronous>, transform_indices = @transform_9, window_bounds = array<i64: 64, 4>}, {pipeline_mode = #tpu.pipeline_mode<synchronous>, transform_indices = @transform_10, window_bounds = array<i64: 1, 4>}, {transform_indices = @transform_11, window_bounds = array<i64: 8, 4>}]} {
    %c0 = arith.constant 0 : index
    %c0_0 = arith.constant 0 : index
    %0 = vector.load %arg1[%c0, %c0_0] : memref<8x8xf32, #tpu.memory_space<vmem>>, vector<8x8xf32>
    %c0_1 = arith.constant 0 : index
    %c0_2 = arith.constant 0 : index
    %1 = vector.load %arg2[%c0_1, %c0_2] : memref<8x64xf32, #tpu.memory_space<vmem>>, vector<8x64xf32>
    %cst = arith.constant dense<0.000000e+00> : vector<8x64xf32>
    %2 = tpu.matmul %0, %1, %cst {dimension_numbers = #tpu.dot_dimension_numbers<[1], [0], [0], [1], [0, 0, 1, 1], [], []>} : vector<8x8xf32>, vector<8x64xf32>, vector<8x64xf32> -> vector<8x64xf32>
    %c0_3 = arith.constant 0 : index
    %c0_4 = arith.constant 0 : index
    %3 = vector.load %arg3[%c0_3, %c0_4] : memref<1x64xf32, #tpu.memory_space<vmem>>, vector<1x64xf32>
    %4 = vector.broadcast %3 : vector<1x64xf32> to vector<8x64xf32>
    %5 = arith.addf %2, %4 : vector<8x64xf32>
    %c0_5 = arith.constant 0 : index
    %c0_6 = arith.constant 0 : index
    %6 = vector.load %arg4[%c0_5, %c0_6] : memref<1x64xf32, #tpu.memory_space<vmem>>, vector<1x64xf32>
    %c0_7 = arith.constant 0 : index
    %c0_8 = arith.constant 0 : index
    %7 = vector.load %arg5[%c0_7, %c0_8] : memref<1x64xf32, #tpu.memory_space<vmem>>, vector<1x64xf32>
    %cst_9 = arith.constant dense<0.000000e+00> : vector<8xf32>
    %8 = vector.multi_reduction <add>, %5, %cst_9 [1] : vector<8x64xf32> to vector<8xf32>
    %9 = vector.shape_cast %8 : vector<8xf32> to vector<8x1xf32>
    %10 = arith.mulf %5, %5 : vector<8x64xf32>
    %cst_10 = arith.constant dense<0.000000e+00> : vector<8xf32>
    %11 = vector.multi_reduction <add>, %10, %cst_10 [1] : vector<8x64xf32> to vector<8xf32>
    %12 = vector.shape_cast %11 : vector<8xf32> to vector<8x1xf32>
    %cst_11 = arith.constant 1.562500e-02 : f32
    %13 = vector.broadcast %cst_11 : f32 to vector<8x1xf32>
    %14 = arith.mulf %9, %13 : vector<8x1xf32>
    %cst_12 = arith.constant 1.562500e-02 : f32
    %15 = vector.broadcast %cst_12 : f32 to vector<8x1xf32>
    %16 = arith.mulf %12, %15 : vector<8x1xf32>
    %17 = arith.mulf %14, %14 : vector<8x1xf32>
    %18 = arith.subf %16, %17 : vector<8x1xf32>
    %cst_13 = arith.constant 0.000000e+00 : f32
    %19 = vector.broadcast %cst_13 : f32 to vector<8x1xf32>
    %20 = arith.maximumf %18, %19 : vector<8x1xf32>
    %21 = vector.broadcast %14 : vector<8x1xf32> to vector<8x64xf32>
    %22 = arith.subf %5, %21 : vector<8x64xf32>
    %cst_14 = arith.constant 9.99999974E-6 : f32
    %23 = vector.broadcast %cst_14 : f32 to vector<8x1xf32>
    %24 = arith.addf %20, %23 : vector<8x1xf32>
    %25 = math.rsqrt %24 : vector<8x1xf32>
    %26 = vector.broadcast %25 : vector<8x1xf32> to vector<8x64xf32>
    %27 = arith.mulf %22, %26 : vector<8x64xf32>
    %28 = vector.broadcast %6 : vector<1x64xf32> to vector<8x64xf32>
    %29 = arith.mulf %27, %28 : vector<8x64xf32>
    %30 = vector.broadcast %7 : vector<1x64xf32> to vector<8x64xf32>
    %31 = arith.addf %29, %30 : vector<8x64xf32>
    %cst_15 = arith.constant 0.000000e+00 : f32
    %32 = vector.broadcast %cst_15 : f32 to vector<8x64xf32>
    %33 = arith.maximumf %31, %32 : vector<8x64xf32>
    %c0_16 = arith.constant 0 : index
    %c0_17 = arith.constant 0 : index
    %34 = vector.load %arg6[%c0_16, %c0_17] : memref<64x64xf32, #tpu.memory_space<vmem>>, vector<64x64xf32>
    %cst_18 = arith.constant dense<0.000000e+00> : vector<8x64xf32>
    %35 = tpu.matmul %33, %34, %cst_18 {dimension_numbers = #tpu.dot_dimension_numbers<[1], [0], [0], [1], [0, 0, 1, 1], [], []>} : vector<8x64xf32>, vector<64x64xf32>, vector<8x64xf32> -> vector<8x64xf32>
    %c0_19 = arith.constant 0 : index
    %c0_20 = arith.constant 0 : index
    %36 = vector.load %arg7[%c0_19, %c0_20] : memref<1x64xf32, #tpu.memory_space<vmem>>, vector<1x64xf32>
    %37 = vector.broadcast %36 : vector<1x64xf32> to vector<8x64xf32>
    %38 = arith.addf %35, %37 : vector<8x64xf32>
    %c0_21 = arith.constant 0 : index
    %c0_22 = arith.constant 0 : index
    %39 = vector.load %arg8[%c0_21, %c0_22] : memref<1x64xf32, #tpu.memory_space<vmem>>, vector<1x64xf32>
    %c0_23 = arith.constant 0 : index
    %c0_24 = arith.constant 0 : index
    %40 = vector.load %arg9[%c0_23, %c0_24] : memref<1x64xf32, #tpu.memory_space<vmem>>, vector<1x64xf32>
    %cst_25 = arith.constant dense<0.000000e+00> : vector<8xf32>
    %41 = vector.multi_reduction <add>, %38, %cst_25 [1] : vector<8x64xf32> to vector<8xf32>
    %42 = vector.shape_cast %41 : vector<8xf32> to vector<8x1xf32>
    %43 = arith.mulf %38, %38 : vector<8x64xf32>
    %cst_26 = arith.constant dense<0.000000e+00> : vector<8xf32>
    %44 = vector.multi_reduction <add>, %43, %cst_26 [1] : vector<8x64xf32> to vector<8xf32>
    %45 = vector.shape_cast %44 : vector<8xf32> to vector<8x1xf32>
    %cst_27 = arith.constant 1.562500e-02 : f32
    %46 = vector.broadcast %cst_27 : f32 to vector<8x1xf32>
    %47 = arith.mulf %42, %46 : vector<8x1xf32>
    %cst_28 = arith.constant 1.562500e-02 : f32
    %48 = vector.broadcast %cst_28 : f32 to vector<8x1xf32>
    %49 = arith.mulf %45, %48 : vector<8x1xf32>
    %50 = arith.mulf %47, %47 : vector<8x1xf32>
    %51 = arith.subf %49, %50 : vector<8x1xf32>
    %cst_29 = arith.constant 0.000000e+00 : f32
    %52 = vector.broadcast %cst_29 : f32 to vector<8x1xf32>
    %53 = arith.maximumf %51, %52 : vector<8x1xf32>
    %54 = vector.broadcast %47 : vector<8x1xf32> to vector<8x64xf32>
    %55 = arith.subf %38, %54 : vector<8x64xf32>
    %cst_30 = arith.constant 9.99999974E-6 : f32
    %56 = vector.broadcast %cst_30 : f32 to vector<8x1xf32>
    %57 = arith.addf %53, %56 : vector<8x1xf32>
    %58 = math.rsqrt %57 : vector<8x1xf32>
    %59 = vector.broadcast %58 : vector<8x1xf32> to vector<8x64xf32>
    %60 = arith.mulf %55, %59 : vector<8x64xf32>
    %61 = vector.broadcast %39 : vector<1x64xf32> to vector<8x64xf32>
    %62 = arith.mulf %60, %61 : vector<8x64xf32>
    %63 = vector.broadcast %40 : vector<1x64xf32> to vector<8x64xf32>
    %64 = arith.addf %62, %63 : vector<8x64xf32>
    %cst_31 = arith.constant 0.000000e+00 : f32
    %65 = vector.broadcast %cst_31 : f32 to vector<8x64xf32>
    %66 = arith.maximumf %64, %65 : vector<8x64xf32>
    %c0_32 = arith.constant 0 : index
    %c0_33 = arith.constant 0 : index
    %67 = vector.load %arg10[%c0_32, %c0_33] : memref<64x4xf32, #tpu.memory_space<vmem>>, vector<64x4xf32>
    %cst_34 = arith.constant dense<0.000000e+00> : vector<8x4xf32>
    %68 = tpu.matmul %66, %67, %cst_34 {dimension_numbers = #tpu.dot_dimension_numbers<[1], [0], [0], [1], [0, 0, 1, 1], [], []>} : vector<8x64xf32>, vector<64x4xf32>, vector<8x4xf32> -> vector<8x4xf32>
    %c0_35 = arith.constant 0 : index
    %c0_36 = arith.constant 0 : index
    %69 = vector.load %arg11[%c0_35, %c0_36] : memref<1x4xf32, #tpu.memory_space<vmem>>, vector<1x4xf32>
    %70 = vector.broadcast %69 : vector<1x4xf32> to vector<8x4xf32>
    %71 = arith.addf %68, %70 : vector<8x4xf32>
    %72 = tpu.iota {dimensions = array<i32: 1>} : vector<8x4xi32>
    %c1_i32 = arith.constant 1 : i32
    %73 = vector.broadcast %c1_i32 : i32 to vector<8x4xi32>
    %74 = arith.cmpi sge, %72, %73 : vector<8x4xi32>
    %cst_37 = arith.constant 0xFF800000 : f32
    %75 = vector.broadcast %cst_37 : f32 to vector<8x4xf32>
    %76 = arith.select %74, %71, %75 : vector<8x4xi1>, vector<8x4xf32>
    %cst_38 = arith.constant dense<0xFF800000> : vector<8xf32>
    %77 = vector.multi_reduction <maximumf>, %76, %cst_38 [1] : vector<8x4xf32> to vector<8xf32>
    %78 = vector.shape_cast %77 : vector<8xf32> to vector<8x1xf32>
    %79 = vector.broadcast %78 : vector<8x1xf32> to vector<8x4xf32>
    %80 = arith.subf %71, %79 : vector<8x4xf32>
    %81 = math.exp %80 : vector<8x4xf32>
    %cst_39 = arith.constant 0.000000e+00 : f32
    %82 = vector.broadcast %cst_39 : f32 to vector<8x4xf32>
    %83 = arith.select %74, %81, %82 : vector<8x4xi1>, vector<8x4xf32>
    %cst_40 = arith.constant dense<0.000000e+00> : vector<8xf32>
    %84 = vector.multi_reduction <add>, %83, %cst_40 [1] : vector<8x4xf32> to vector<8xf32>
    %85 = vector.shape_cast %84 : vector<8xf32> to vector<8x1xf32>
    %86 = math.log %85 : vector<8x1xf32>
    %87 = vector.broadcast %86 : vector<8x1xf32> to vector<8x4xf32>
    %88 = arith.subf %80, %87 : vector<8x4xf32>
    %89 = arith.select %74, %88, %71 : vector<8x4xi1>, vector<8x4xf32>
    %c0_41 = arith.constant 0 : index
    %c0_42 = arith.constant 0 : index
    %90 = vector.load %arg12[%c0_41, %c0_42] : memref<8x4xf32, #tpu.memory_space<vmem>>, vector<8x4xf32>
    tpu.vector_store %arg12[%c0_41, %c0_42], %89 {strides = array<i32>} : memref<8x4xf32, #tpu.memory_space<vmem>>, vector<8x4xf32>,
    return
  }
  func.func @transform_0(%arg0: i32) -> (i32, i32) {
    %c0_i32 = arith.constant 0 : i32
    %c0_i32_0 = arith.constant 0 : i32
    return %arg0, %c0_i32 : i32, i32
  }
  func.func @transform_1(%arg0: i32) -> (i32, i32) {
    %c0_i32 = arith.constant 0 : i32
    %c0_i32_0 = arith.constant 0 : i32
    %c0_i32_1 = arith.constant 0 : i32
    return %c0_i32, %c0_i32_0 : i32, i32
  }
  func.func @transform_2(%arg0: i32) -> (i32, i32) {
    %c0_i32 = arith.constant 0 : i32
    %c0_i32_0 = arith.constant 0 : i32
    %c0_i32_1 = arith.constant 0 : i32
    return %c0_i32, %c0_i32_0 : i32, i32
  }
  func.func @transform_3(%arg0: i32) -> (i32, i32) {
    %c0_i32 = arith.constant 0 : i32
    %c0_i32_0 = arith.constant 0 : i32
    %c0_i32_1 = arith.constant 0 : i32
    return %c0_i32, %c0_i32_0 : i32, i32
  }
  func.func @transform_4(%arg0: i32) -> (i32, i32) {
    %c0_i32 = arith.constant 0 : i32
    %c0_i32_0 = arith.constant 0 : i32
    %c0_i32_1 = arith.constant 0 : i32
    return %c0_i32, %c0_i32_0 : i32, i32
  }
  func.func @transform_5(%arg0: i32) -> (i32, i32) {
    %c0_i32 = arith.constant 0 : i32
    %c0_i32_0 = arith.constant 0 : i32
    %c0_i32_1 = arith.constant 0 : i32
    return %c0_i32, %c0_i32_0 : i32, i32
  }
  func.func @transform_6(%arg0: i32) -> (i32, i32) {
    %c0_i32 = arith.constant 0 : i32
    %c0_i32_0 = arith.constant 0 : i32
    %c0_i32_1 = arith.constant 0 : i32
    return %c0_i32, %c0_i32_0 : i32, i32
  }
  func.func @transform_7(%arg0: i32) -> (i32, i32) {
    %c0_i32 = arith.constant 0 : i32
    %c0_i32_0 = arith.constant 0 : i32
    %c0_i32_1 = arith.constant 0 : i32
    return %c0_i32, %c0_i32_0 : i32, i32
  }
  func.func @transform_8(%arg0: i32) -> (i32, i32) {
    %c0_i32 = arith.constant 0 : i32
    %c0_i32_0 = arith.constant 0 : i32
    %c0_i32_1 = arith.constant 0 : i32
    return %c0_i32, %c0_i32_0 : i32, i32
  }
  func.func @transform_9(%arg0: i32) -> (i32, i32) {
    %c0_i32 = arith.constant 0 : i32
    %c0_i32_0 = arith.constant 0 : i32
    %c0_i32_1 = arith.constant 0 : i32
    return %c0_i32, %c0_i32_0 : i32, i32
  }
  func.func @transform_10(%arg0: i32) -> (i32, i32) {
    %c0_i32 = arith.constant 0 : i32
    %c0_i32_0 = arith.constant 0 : i32
    %c0_i32_1 = arith.constant 0 : i32
    return %c0_i32, %c0_i32_0 : i32, i32
  }
  func.func @transform_11(%arg0: i32) -> (i32, i32) {
    %c0_i32 = arith.constant 0 : i32
    %c0_i32_0 = arith.constant 0 : i32
    return %arg0, %c0_i32 : i32, i32
  }
}

</mosaic_0001>

<llo_original>
// kernel: tpu_custom_call.1
$region0: #{tpu_custom_call.1}
  #allocation0 [shape = 'u32[]', space=smem, size = 0x4, offset = 0x4, fixed_abs, tag = 'smem constant byte address 0x4 - core index']
  #allocation1 [shape = 'u32[144,128]{1,0:T(1,128)}', space=vmem, size = 0x12000, scoped, tag = 'internal scratch']
  %s0 = inlined_call_operand.vmem [shape: f32[8,8], index: 0, kind: input, shape index: {}]
  %s1 = inlined_call_operand.hbm [shape: f32[8,64], index: 1, kind: input, shape index: {}]
  %s2 = inlined_call_operand.vmem [shape: f32[1,64], index: 2, kind: input, shape index: {}]
  %s3 = inlined_call_operand.vmem [shape: f32[1,64], index: 3, kind: input, shape index: {}]
  %s4 = inlined_call_operand.hbm [shape: f32[1,64], index: 4, kind: input, shape index: {}]
  %s5 = inlined_call_operand.vmem [shape: f32[64,64], index: 5, kind: input, shape index: {}]
  %s6 = inlined_call_operand.hbm [shape: f32[1,64], index: 6, kind: input, shape index: {}]
  %s7 = inlined_call_operand.vmem [shape: f32[1,64], index: 7, kind: input, shape index: {}]
  %s8 = inlined_call_operand.vmem [shape: f32[1,64], index: 8, kind: input, shape index: {}]
  %s9 = inlined_call_operand.vmem [shape: f32[64,4], index: 9, kind: input, shape index: {}]
  %s10 = inlined_call_operand.vmem [shape: f32[1,4], index: 10, kind: input, shape index: {}]
  %s11 = inlined_call_operand.vmem [shape: f32[8,4], index: 11, kind: output, shape index: {}]
  %s12 = sld [smem:[#allocation0]]
  $region66: #{tpu_custom_call.1} parent=0
    _
  %s14 = ssub.s32 1, %s12
  %s15 = scalar_select 0, %s14, %s12
  $region1: #{tpu_custom_call.1} parent=0
    #allocation2 [shape = 'u8[4096]{0}', space=vmem, size = 0x1000, scoped, tag = 'input window, operand 1, single buffered']
    #allocation3 [shape = 's32[1]{0}', space=sflag, size = 0x4, scoped, tag = 'scoped memory for tpu_custom_call.1']
    #allocation4 [shape = 'u8[512]{0}', space=vmem, size = 0x400, scoped, tag = 'input window, operand 4, single buffered']
    #allocation5 [shape = 's32[1]{0}', space=sflag, size = 0x4, scoped, tag = 'scoped memory for tpu_custom_call.1']
    #allocation6 [shape = 'u8[512]{0}', space=vmem, size = 0x400, scoped, tag = 'input window, operand 6, single buffered']
    %16 = vsyncpa [#allocation3], 0
    %17 = vsyncpa [#allocation5], 0
    // Predicated region
    $region2: #{tpu_custom_call.1} parent=1 // pred_check
      _
    $region3: #{tpu_custom_call.1} parent=1 // pred_check_branch
      %19 = sbr.rel (0) target = $region5
    $region4: #{tpu_custom_call.1} parent=1 // pred_region
      _
    $region5: #{tpu_custom_call.1} parent=1 // pred_fallthru
      _
    // Predicated region
    $region6: #{tpu_custom_call.1} parent=1 // pred_check
      _
    $region7: #{tpu_custom_call.1} parent=1 // pred_check_branch
      %21 = sbr.rel (0) target = $region9
    $region8: #{tpu_custom_call.1} parent=1 // pred_region
      %s23 = ssub.s32 128, 128
      %24 = vsyncadd [#allocation3], %s23
      %s26 = sshll.u32 [#allocation2], 4
      %s27 = int_to_ptr.vmem [resolvable:$true] %s26
      %29 = dma.hbm_to_vmem [thread:$0]  %s1, 128, %s27, [#allocation3]
    $region9: #{tpu_custom_call.1} parent=1 // pred_fallthru
      _
    // Predicated region
    $region10: #{tpu_custom_call.1} parent=1 // pred_check
      _
    $region11: #{tpu_custom_call.1} parent=1 // pred_check_branch
      %31 = sbr.rel (0) target = $region13
    $region12: #{tpu_custom_call.1} parent=1 // pred_region
      _
    $region13: #{tpu_custom_call.1} parent=1 // pred_fallthru
      _
    // Predicated region
    $region14: #{tpu_custom_call.1} parent=1 // pred_check
      _
    $region15: #{tpu_custom_call.1} parent=1 // pred_check_branch
      %33 = sbr.rel (0) target = $region17
    $region16: #{tpu_custom_call.1} parent=1 // pred_region
      _
    $region17: #{tpu_custom_call.1} parent=1 // pred_fallthru
      _
    // Predicated region
    $region18: #{tpu_custom_call.1} parent=1 // pred_check
      _
    $region19: #{tpu_custom_call.1} parent=1 // pred_check_branch
      %35 = sbr.rel (0) target = $region21
    $region20: #{tpu_custom_call.1} parent=1 // pred_region
      %s37 = ssub.s32 16, 16
      %38 = vsyncadd [#allocation5], %s37
      %s40 = sshll.u32 [#allocation4], 4
      %s41 = int_to_ptr.vmem [resolvable:$true] %s40
      %43 = dma.hbm_to_vmem [thread:$0]  %s4, 16, %s41, [#allocation5]
    $region21: #{tpu_custom_call.1} parent=1 // pred_fallthru
      _
    // Predicated region
    $region22: #{tpu_custom_call.1} parent=1 // pred_check
      _
    $region23: #{tpu_custom_call.1} parent=1 // pred_check_branch
      %45 = sbr.rel (0) target = $region25
    $region24: #{tpu_custom_call.1} parent=1 // pred_region
      _
    $region25: #{tpu_custom_call.1} parent=1 // pred_fallthru
      _
    // Predicated region
    $region26: #{tpu_custom_call.1} parent=1 // pred_check
      _
    $region27: #{tpu_custom_call.1} parent=1 // pred_check_branch
      %47 = sbr.rel (0) target = $region29
    $region28: #{tpu_custom_call.1} parent=1 // pred_region
      %s49 = ssub.s32 16, 16
      %50 = vsyncadd [#allocation5], %s49
      %s52 = sshll.u32 [#allocation6], 4
      %s53 = int_to_ptr.vmem [resolvable:$true] %s52
      %55 = dma.hbm_to_vmem [thread:$0]  %s6, 16, %s53, [#allocation5]
    $region29: #{tpu_custom_call.1} parent=1 // pred_fallthru
      _
    // Predicated region
    $region30: #{tpu_custom_call.1} parent=1 // pred_check
      _
    $region31: #{tpu_custom_call.1} parent=1 // pred_check_branch
      %57 = sbr.rel (0) target = $region33
    $region32: #{tpu_custom_call.1} parent=1 // pred_region
      _
    $region33: #{tpu_custom_call.1} parent=1 // pred_fallthru
      _
    // Predicated region
    $region34: #{tpu_custom_call.1} parent=1 // pred_check
      _
    $region35: #{tpu_custom_call.1} parent=1 // pred_check_branch
      %59 = sbr.rel (0) target = $region37
    $region36: #{tpu_custom_call.1} parent=1 // pred_region
      _
    $region37: #{tpu_custom_call.1} parent=1 // pred_fallthru
      _
    // Predicated region
    $region38: #{tpu_custom_call.1} parent=1 // pred_check
      _
    $region39: #{tpu_custom_call.1} parent=1 // pred_check_branch
      %61 = sbr.rel (0) target = $region41
    $region40: #{tpu_custom_call.1} parent=1 // pred_region
      _
    $region41: #{tpu_custom_call.1} parent=1 // pred_fallthru
      _
    // Predicated region
    $region42: #{tpu_custom_call.1} parent=1 // pred_check
      _
    $region43: #{tpu_custom_call.1} parent=1 // pred_check_branch
      %63 = sbr.rel (0) target = $region45
    $region44: #{tpu_custom_call.1} parent=1 // pred_region
      _
    $region45: #{tpu_custom_call.1} parent=1 // pred_fallthru
      _
    // Predicated region
    $region46: #{tpu_custom_call.1} parent=1 // pred_check
      _
    $region47: #{tpu_custom_call.1} parent=1 // pred_check_branch
      %65 = sbr.rel (0) target = $region49
    $region48: #{tpu_custom_call.1} parent=1 // pred_region
      %66 = dma.done [#allocation3], 128
    $region49: #{tpu_custom_call.1} parent=1 // pred_fallthru
      _
    // Predicated region
    $region50: #{tpu_custom_call.1} parent=1 // pred_check
      _
    $region51: #{tpu_custom_call.1} parent=1 // pred_check_branch
      %68 = sbr.rel (0) target = $region53
    $region52: #{tpu_custom_call.1} parent=1 // pred_region
      %69 = dma.done [#allocation5], 16
    $region53: #{tpu_custom_call.1} parent=1 // pred_fallthru
      _
    // Predicated region
    $region54: #{tpu_custom_call.1} parent=1 // pred_check
      _
    $region55: #{tpu_custom_call.1} parent=1 // pred_check_branch
      %71 = sbr.rel (0) target = $region57
    $region56: #{tpu_custom_call.1} parent=1 // pred_region
      %72 = dma.done [#allocation5], 16
    $region57: #{tpu_custom_call.1} parent=1 // pred_fallthru
      _
    %v73 = vld [vmem:[%s0] sm:$0xff]
    %v74 = vld [vmem:[#allocation2] sm:$0xff]
    %v75 = vld [vmem:[%s2] sm:$0x1]
    %v77 = vlaneseq
    %v78 = vshrl.u32 %v77, 7
    %v79 = vsub.s32 0, %v78
    %v80 = vrot.slane %v75, %v79
    %vm82 = vcmask 64512
    %v84 = vsel %vm82, %v73, 0
    %86 = vmatprep.subr.mxu0 0.0
    %87 = vmatpush1.msra.mxu0 0.0
    %88 = vmatprep.subr.mxu0 0.0
    %89 = vmatpush1.msra.mxu0 0.0
    %90 = vmatprep.subr.mxu0 0.0
    %91 = vmatpush1.msra.mxu0 0.0
    %92 = vmatprep.subr.mxu0 0.0
    %93 = vmatpush1.msra.mxu0 0.0
    %94 = vmatprep.subr.mxu0 0.0
    %95 = vmatpush1.msra.mxu0 0.0
    %96 = vmatprep.subr.mxu0 0.0
    %97 = vmatpush1.msra.mxu0 0.0
    %98 = vmatprep.subr.mxu0 0.0
    %99 = vmatpush1.msra.mxu0 0.0
    %100 = vmatprep.subr.mxu0 0.0
    %101 = vmatpush1.msra.mxu0 0.0
    %102 = vmatprep.subr.mxu0 0.0
    %103 = vmatpush1.msra.mxu0 0.0
    %104 = vmatprep.subr.mxu0 0.0
    %105 = vmatpush1.msra.mxu0 0.0
    %106 = vmatprep.subr.mxu0 0.0
    %107 = vmatpush1.msra.mxu0 0.0
    %108 = vmatprep.subr.mxu0 0.0
    %109 = vmatpush1.msra.mxu0 0.0
    %110 = vmatprep.subr.mxu0 0.0
    %111 = vmatpush1.msra.mxu0 0.0
    %112 = vmatprep.subr.mxu0 0.0
    %113 = vmatpush1.msra.mxu0 0.0
    %114 = vmatprep.subr.mxu0 0.0
    %115 = vmatpush1.msra.mxu0 0.0
    %116 = vmatprep.subr.mxu0 0.0
    %117 = vmatpush1.msra.mxu0 %v74
    %118 = vmatprep.subr.mxu0 0.0
    %119 = vmatpush2.msra.mxu0 0.0
    %120 = vmatprep.subr.mxu0 0.0
    %121 = vmatpush2.msra.mxu0 0.0
    %122 = vmatprep.subr.mxu0 0.0
    %123 = vmatpush2.msra.mxu0 0.0
    %124 = vmatprep.subr.mxu0 0.0
    %125 = vmatpush2.msra.mxu0 0.0
    %126 = vmatprep.subr.mxu0 0.0
    %127 = vmatpush2.msra.mxu0 0.0
    %128 = vmatprep.subr.mxu0 0.0
    %129 = vmatpush2.msra.mxu0 0.0
    %130 = vmatprep.subr.mxu0 0.0
    %131 = vmatpush2.msra.mxu0 0.0
    %132 = vmatprep.subr.mxu0 0.0
    %133 = vmatpush2.msra.mxu0 0.0
    %134 = vmatprep.subr.mxu0 0.0
    %135 = vmatpush2.msra.mxu0 0.0
    %136 = vmatprep.subr.mxu0 0.0
    %137 = vmatpush2.msra.mxu0 0.0
    %138 = vmatprep.subr.mxu0 0.0
    %139 = vmatpush2.msra.mxu0 0.0
    %140 = vmatprep.subr.mxu0 0.0
    %141 = vmatpush2.msra.mxu0 0.0
    %142 = vmatprep.subr.mxu0 0.0
    %143 = vmatpush2.msra.mxu0 0.0
    %144 = vmatprep.subr.mxu0 0.0
    %145 = vmatpush2.msra.mxu0 0.0
    %146 = vmatprep.subr.mxu0 0.0
    %147 = vmatpush2.msra.mxu0 0.0
    %148 = vmatprep.subr.mxu0 0.0
    %149 = vmatpush2.msra.mxu0 0.0
    %150 = vmatprep.mubr.f32.mxu0 0.0
    %151 = vmatmul.mubr.f32.gmra.mxu0 %v84
    %v152 = vpop.f32.mrf.mxu0
    %v153 = vadd.f32 %v80, %v152
    %v154 = vpop.f32.mrf.mxu0
    %155 = vdwg.mxu0
    %v156 = vld [vmem:[%s3] sm:$0x1]
    %v157 = vld [vmem:[#allocation4] sm:$0x1]
    %vm158 = vcmask 523264
    %v159 = vsel %vm158, %v153, 0.0
    %160 = vadd.xlane.f32.xlu0 %v159
    %v161 = vpop.xlane.xlu0 %160
    %v162 = vmul.f32 %v153, %v153
    %v163 = vsel %vm158, %v162, 0.0
    %164 = vadd.xlane.f32.xlu0 %v163
    %v165 = vpop.xlane.xlu0 %164
    %v166 = vmul.f32 %v161, 0.015625
    %v167 = vmul.f32 %v165, 0.015625
    %v168 = vmul.f32 %v166, %v166
    %v169 = vsub.f32 %v167, %v168
    %v170 = vmax.f32 %v169, 0.0
    %v171 = vsub.f32 %v153, %v166
    %v172 = vadd.f32 %v170, 1e-05
    %v173 = vrsqrt.pop %v172
    %v174 = vmul.f32 %v171, %v173
    %v176 = vlaneseq
    %v177 = vshrl.u32 %v176, 7
    %v178 = vsub.s32 0, %v177
    %v179 = vrot.slane %v156, %v178
    %v181 = vmul.f32 %v174, %v179
    %v183 = vlaneseq
    %v184 = vshrl.u32 %v183, 7
    %v185 = vsub.s32 0, %v184
    %v186 = vrot.slane %v157, %v185
    %v188 = vadd.f32 %v181, %v186
    %v189 = vmax.f32 %v188, 0.0
    %v190 = vld [vmem:[%s5] sm:$0xff]
    %v191 = vld [vmem:[%s5 + $0x8] sm:$0xff]
    %v192 = vld [vmem:[%s5 + $0x10] sm:$0xff]
    %v193 = vld [vmem:[%s5 + $0x18] sm:$0xff]
    %v194 = vld [vmem:[%s5 + $0x20] sm:$0xff]
    %v195 = vld [vmem:[%s5 + $0x28] sm:$0xff]
    %v196 = vld [vmem:[%s5 + $0x30] sm:$0xff]
    %v197 = vld [vmem:[%s5 + $0x38] sm:$0xff]
    %v198 = vld [vmem:[#allocation6] sm:$0x1]
    %v200 = vlaneseq
    %v201 = vshrl.u32 %v200, 7
    %v202 = vsub.s32 0, %v201
    %v203 = vrot.slane %v198, %v202
    %v206 = vsel %vm158, %v189, 0
    %208 = vmatprep.subr.mxu0 0.0
    %209 = vmatpush1.msra.mxu0 0.0
    %210 = vmatprep.subr.mxu0 0.0
    %211 = vmatpush1.msra.mxu0 0.0
    %212 = vmatprep.subr.mxu0 0.0
    %213 = vmatpush1.msra.mxu0 0.0
    %214 = vmatprep.subr.mxu0 0.0
    %215 = vmatpush1.msra.mxu0 0.0
    %216 = vmatprep.subr.mxu0 0.0
    %217 = vmatpush1.msra.mxu0 0.0
    %218 = vmatprep.subr.mxu0 0.0
    %219 = vmatpush1.msra.mxu0 0.0
    %220 = vmatprep.subr.mxu0 0.0
    %221 = vmatpush1.msra.mxu0 0.0
    %222 = vmatprep.subr.mxu0 0.0
    %223 = vmatpush1.msra.mxu0 0.0
    %224 = vmatprep.subr.mxu0 0.0
    %225 = vmatpush1.msra.mxu0 %v197
    %226 = vmatprep.subr.mxu0 0.0
    %227 = vmatpush1.msra.mxu0 %v196
    %228 = vmatprep.subr.mxu0 0.0
    %229 = vmatpush1.msra.mxu0 %v195
    %230 = vmatprep.subr.mxu0 0.0
    %231 = vmatpush1.msra.mxu0 %v194
    %232 = vmatprep.subr.mxu0 0.0
    %233 = vmatpush1.msra.mxu0 %v193
    %234 = vmatprep.subr.mxu0 0.0
    %235 = vmatpush1.msra.mxu0 %v192
    %236 = vmatprep.subr.mxu0 0.0
    %237 = vmatpush1.msra.mxu0 %v191
    %238 = vmatprep.subr.mxu0 0.0
    %239 = vmatpush1.msra.mxu0 %v190
    %240 = vmatprep.subr.mxu0 0.0
    %241 = vmatpush2.msra.mxu0 0.0
    %242 = vmatprep.subr.mxu0 0.0
    %243 = vmatpush2.msra.mxu0 0.0
    %244 = vmatprep.subr.mxu0 0.0
    %245 = vmatpush2.msra.mxu0 0.0
    %246 = vmatprep.subr.mxu0 0.0
    %247 = vmatpush2.msra.mxu0 0.0
    %248 = vmatprep.subr.mxu0 0.0
    %249 = vmatpush2.msra.mxu0 0.0
    %250 = vmatprep.subr.mxu0 0.0
    %251 = vmatpush2.msra.mxu0 0.0
    %252 = vmatprep.subr.mxu0 0.0
    %253 = vmatpush2.msra.mxu0 0.0
    %254 = vmatprep.subr.mxu0 0.0
    %255 = vmatpush2.msra.mxu0 0.0
    %256 = vmatprep.subr.mxu0 0.0
    %257 = vmatpush2.msra.mxu0 0.0
    %258 = vmatprep.subr.mxu0 0.0
    %259 = vmatpush2.msra.mxu0 0.0
    %260 = vmatprep.subr.mxu0 0.0
    %261 = vmatpush2.msra.mxu0 0.0
    %262 = vmatprep.subr.mxu0 0.0
    %263 = vmatpush2.msra.mxu0 0.0
    %264 = vmatprep.subr.mxu0 0.0
    %265 = vmatpush2.msra.mxu0 0.0
    %266 = vmatprep.subr.mxu0 0.0
    %267 = vmatpush2.msra.mxu0 0.0
    %268 = vmatprep.subr.mxu0 0.0
    %269 = vmatpush2.msra.mxu0 0.0
    %270 = vmatprep.subr.mxu0 0.0
    %271 = vmatpush2.msra.mxu0 0.0
    %272 = vmatprep.mubr.f32.mxu0 0.0
    %273 = vmatmul.mubr.f32.gmra.mxu0 %v206
    %v274 = vpop.f32.mrf.mxu0
    %v275 = vadd.f32 %v203, %v274
    %v276 = vpop.f32.mrf.mxu0
    %277 = vdwg.mxu0
    %v278 = vld [vmem:[%s7] sm:$0x1]
    %v279 = vld [vmem:[%s8] sm:$0x1]
    %v280 = vsel %vm158, %v275, 0.0
    %281 = vadd.xlane.f32.xlu0 %v280
    %v282 = vpop.xlane.xlu0 %281
    %v283 = vmul.f32 %v275, %v275
    %v284 = vsel %vm158, %v283, 0.0
    %285 = vadd.xlane.f32.xlu0 %v284
    %v286 = vpop.xlane.xlu0 %285
    %v287 = vmul.f32 %v282, 0.015625
    %v288 = vmul.f32 %v286, 0.015625
    %v289 = vmul.f32 %v287, %v287
    %v290 = vsub.f32 %v288, %v289
    %v291 = vmax.f32 %v290, 0.0
    %v292 = vsub.f32 %v275, %v287
    %v293 = vadd.f32 %v291, 1e-05
    %v294 = vrsqrt.pop %v293
    %v295 = vmul.f32 %v292, %v294
    %v297 = vlaneseq
    %v298 = vshrl.u32 %v297, 7
    %v299 = vsub.s32 0, %v298
    %v300 = vrot.slane %v278, %v299
    %v302 = vmul.f32 %v295, %v300
    %v304 = vlaneseq
    %v305 = vshrl.u32 %v304, 7
    %v306 = vsub.s32 0, %v305
    %v307 = vrot.slane %v279, %v306
    %v309 = vadd.f32 %v302, %v307
    %v310 = vmax.f32 %v309, 0.0
    %v311 = vld [vmem:[%s9] sm:$0xff]
    %v312 = vld [vmem:[%s9 + $0x8] sm:$0xff]
    %v313 = vld [vmem:[%s9 + $0x10] sm:$0xff]
    %v314 = vld [vmem:[%s9 + $0x18] sm:$0xff]
    %v315 = vld [vmem:[%s9 + $0x20] sm:$0xff]
    %v316 = vld [vmem:[%s9 + $0x28] sm:$0xff]
    %v317 = vld [vmem:[%s9 + $0x30] sm:$0xff]
    %v318 = vld [vmem:[%s9 + $0x38] sm:$0xff]
    %v319 = vld [vmem:[%s10] sm:$0x1]
    %v321 = vlaneseq
    %v322 = vshrl.u32 %v321, 7
    %v323 = vsub.s32 0, %v322
    %v324 = vrot.slane %v319, %v323
    %v327 = vsel %vm158, %v310, 0
    %329 = vmatprep.subr.mxu0 0.0
    %330 = vmatpush1.msra.mxu0 0.0
    %331 = vmatprep.subr.mxu0 0.0
    %332 = vmatpush1.msra.mxu0 0.0
    %333 = vmatprep.subr.mxu0 0.0
    %334 = vmatpush1.msra.mxu0 0.0
    %335 = vmatprep.subr.mxu0 0.0
    %336 = vmatpush1.msra.mxu0 0.0
    %337 = vmatprep.subr.mxu0 0.0
    %338 = vmatpush1.msra.mxu0 0.0
    %339 = vmatprep.subr.mxu0 0.0
    %340 = vmatpush1.msra.mxu0 0.0
    %341 = vmatprep.subr.mxu0 0.0
    %342 = vmatpush1.msra.mxu0 0.0
    %343 = vmatprep.subr.mxu0 0.0
    %344 = vmatpush1.msra.mxu0 0.0
    %345 = vmatprep.subr.mxu0 0.0
    %346 = vmatpush1.msra.mxu0 %v318
    %347 = vmatprep.subr.mxu0 0.0
    %348 = vmatpush1.msra.mxu0 %v317
    %349 = vmatprep.subr.mxu0 0.0
    %350 = vmatpush1.msra.mxu0 %v316
    %351 = vmatprep.subr.mxu0 0.0
    %352 = vmatpush1.msra.mxu0 %v315
    %353 = vmatprep.subr.mxu0 0.0
    %354 = vmatpush1.msra.mxu0 %v314
    %355 = vmatprep.subr.mxu0 0.0
    %356 = vmatpush1.msra.mxu0 %v313
    %357 = vmatprep.subr.mxu0 0.0
    %358 = vmatpush1.msra.mxu0 %v312
    %359 = vmatprep.subr.mxu0 0.0
    %360 = vmatpush1.msra.mxu0 %v311
    %361 = vmatprep.subr.mxu0 0.0
    %362 = vmatpush2.msra.mxu0 0.0
    %363 = vmatprep.subr.mxu0 0.0
    %364 = vmatpush2.msra.mxu0 0.0
    %365 = vmatprep.subr.mxu0 0.0
    %366 = vmatpush2.msra.mxu0 0.0
    %367 = vmatprep.subr.mxu0 0.0
    %368 = vmatpush2.msra.mxu0 0.0
    %369 = vmatprep.subr.mxu0 0.0
    %370 = vmatpush2.msra.mxu0 0.0
    %371 = vmatprep.subr.mxu0 0.0
    %372 = vmatpush2.msra.mxu0 0.0
    %373 = vmatprep.subr.mxu0 0.0
    %374 = vmatpush2.msra.mxu0 0.0
    %375 = vmatprep.subr.mxu0 0.0
    %376 = vmatpush2.msra.mxu0 0.0
    %377 = vmatprep.subr.mxu0 0.0
    %378 = vmatpush2.msra.mxu0 0.0
    %379 = vmatprep.subr.mxu0 0.0
    %380 = vmatpush2.msra.mxu0 0.0
    %381 = vmatprep.subr.mxu0 0.0
    %382 = vmatpush2.msra.mxu0 0.0
    %383 = vmatprep.subr.mxu0 0.0
    %384 = vmatpush2.msra.mxu0 0.0
    %385 = vmatprep.subr.mxu0 0.0
    %386 = vmatpush2.msra.mxu0 0.0
    %387 = vmatprep.subr.mxu0 0.0
    %388 = vmatpush2.msra.mxu0 0.0
    %389 = vmatprep.subr.mxu0 0.0
    %390 = vmatpush2.msra.mxu0 0.0
    %391 = vmatprep.subr.mxu0 0.0
    %392 = vmatpush2.msra.mxu0 0.0
    %393 = vmatprep.mubr.f32.mxu0 0.0
    %394 = vmatmul.mubr.f32.gmra.mxu0 %v327
    %v395 = vpop.f32.mrf.mxu0
    %v396 = vadd.f32 %v324, %v395
    %v397 = vpop.f32.mrf.mxu0
    %398 = vdwg.mxu0
    %v399 = vlaneseq
    %v400 = vand.u32 %v399, 127
    %vm401 = vcmp.ge.s32.totalorder %v400, 1
    %v402 = vsel %vm401, %v396, -inf
    %vm403 = vcmask 31744
    %v404 = vsel %vm403, %v402, -inf
    %405 = vmax.xlane.f32.xlu0 %v404
    %v406 = vpop.xlane.xlu0 %405
    %v407 = vsub.f32 %v396, %v406
    %v408 = vmul.f32 %v407, 1.442695
    %v409 = vpow.pop %v408
    %v410 = vsel %vm401, %v409, 0.0
    %v411 = vsel %vm403, %v410, 0.0
    %412 = vadd.xlane.f32.xlu0 %v411
    %v413 = vpop.xlane.xlu0 %412
    %v414 = vlog2.pop %v413
    %v415 = vmul.f32 %v414, 0.6931472
    %v416 = vsub.f32 %v407, %v415
    %v417 = vsel %vm401, %v416, %v396
    %418 = vst.msk [vmem:[%s11] sm:$0xff] %vm403, %v417
    // Predicated region
    $region58: #{tpu_custom_call.1} parent=1 // pred_check
      _
    $region59: #{tpu_custom_call.1} parent=1 // pred_check_branch
      %420 = sbr.rel (0) target = $region61
    $region60: #{tpu_custom_call.1} parent=1 // pred_region
      _
    $region61: #{tpu_custom_call.1} parent=1 // pred_fallthru
      _
    // Predicated region
    $region62: #{tpu_custom_call.1} parent=1 // pred_check
      _
    $region63: #{tpu_custom_call.1} parent=1 // pred_check_branch
      %422 = sbr.rel (0) target = $region65
    $region64: #{tpu_custom_call.1} parent=1 // pred_region
      _
    $region65: #{tpu_custom_call.1} parent=1 // pred_fallthru
      _
    %423 = vsyncpa [#allocation3], 1
    %424 = vsyncpa [#allocation5], 1

</llo_original>
